<compile_context>
chip_gen: v7x
topology: tpu7x:2x2x1
jax: 0.10.0
libtpu: 0.0.40
codegen_flags: <defaults>
</compile_context>

<pallas_src>
from functools import partial

import jax
import jax.numpy as jnp
from jax.experimental import pallas as pl
from jax.experimental.pallas import tpu as pltpu


def _layernorm_kernel(x_ref, g_ref, o_ref, *, eps):
    # x_ref: (row_tile, dim), g_ref: (1, dim), o_ref: (row_tile, dim)
    x = x_ref[...].astype(jnp.float32)
    g = g_ref[...].astype(jnp.float32)

    # y = x / amax(x): per-row reciprocal + broadcast multiply (one full-tile
    # VPU pass).  Keeps reference semantics, incl. inf/NaN when amax == 0, and
    # keeps eps regularization in the y domain (no eps*amax^2 range issues).
    amax = jnp.max(x, axis=-1, keepdims=True)            # (rows, 1)
    y = x * (1.0 / amax)

    # One-pass f32 statistics: var = E[y^2] - E[y]^2, clamped at 0.
    mean = jnp.mean(y, axis=-1, keepdims=True)            # (rows, 1)
    mean_sq = jnp.mean(y * y, axis=-1, keepdims=True)     # (rows, 1)
    var = jnp.maximum(mean_sq - mean * mean, 0.0)

    o_ref[...] = ((y - mean) * jax.lax.rsqrt(var + eps) * g).astype(o_ref.dtype)


def _vmem_capacity_bytes():
    """Per-TensorCore VMEM capacity; conservative fallback if query fails."""
    try:
        info = pltpu.get_tpu_info()
        cap = getattr(info, "vmem_capacity_bytes", None)
        if cap:
            return int(cap)
    except Exception:
        pass
    return 64 << 20  # v7x per-TC; v5e/v6e actually have 128 MiB (conservative)


def _pick_row_tile(rows, dim, itemsize, vmem_capacity):
    """Largest row tile whose full working set fits ~60% of VMEM.

    Working set per row of tile:
      2 * in block + 2 * out block (double buffered, input dtype)
      + ~3 f32 temporaries (x upcast, y, reduction temp).
    """
    sublane = 16 if itemsize == 2 else 8
    bytes_per_row = dim * (4 * itemsize + 3 * 4)
    budget = int(vmem_capacity * 0.6)
    row_tile = (budget // bytes_per_row) // sublane * sublane
    row_tile = max(sublane, min(int(row_tile), 32768))

    rows_rounded = ((rows + sublane - 1) // sublane) * sublane
    # Ensure >= 2 grid steps when rows allow, so the "parallel" row axis can
    # split across v7x's two TensorCores (no-op on single-TC v5e/v6e).
    half = (rows_rounded // 2) // sublane * sublane
    cap = half if half >= sublane else rows_rounded
    return min(row_tile, cap)


def layer_norm(x, g, eps=1e-05, *, row_tile=None):
    """x: (..., dim), g: (dim,). Returns same shape/dtype as x."""
    dim = x.shape[-1]
    orig_shape = x.shape
    x2 = x.reshape(-1, dim)                    # view-like reshape, no padding
    rows = x2.shape[0]
    itemsize = jnp.dtype(x.dtype).itemsize
    vmem_capacity = _vmem_capacity_bytes()

    if row_tile is None:
        row_tile = _pick_row_tile(rows, dim, itemsize, vmem_capacity)

    grid = pl.cdiv(rows, row_tile)             # ragged last tile is masked
    g2 = g.reshape(1, dim)

    # Explicit VMEM budget for the chosen tile: double-buffered in/out blocks
    # in the input dtype + ~3 f32 temporaries + the (tiny) g buffers + headroom.
    io_block = row_tile * dim * itemsize
    f32_block = row_tile * dim * 4
    g_bytes = dim * jnp.dtype(g.dtype).itemsize
    vmem_limit = 4 * io_block + 3 * f32_block + 2 * g_bytes + (4 << 20)
    vmem_limit = max(vmem_limit, 16 << 20)
    vmem_limit = min(vmem_limit, int(vmem_capacity * 0.9))

    out = pl.pallas_call(
        partial(_layernorm_kernel, eps=eps),
        out_shape=jax.ShapeDtypeStruct((rows, dim), x.dtype),
        grid_spec=pltpu.PrefetchScalarGridSpec(
            num_scalar_prefetch=0,
            grid=(grid,),
            in_specs=[
                pl.BlockSpec((row_tile, dim), lambda i: (i, 0)),
                # g: constant index_map -> same tiny (1, dim) block every step.
                pl.BlockSpec((1, dim), lambda i: (0, 0)),
            ],
            out_specs=pl.BlockSpec((row_tile, dim), lambda i: (i, 0)),
        ),
        compiler_params=pltpu.CompilerParams(
            dimension_semantics=("parallel",),   # row loop splits across TCs on v7x
            vmem_limit_bytes=int(vmem_limit),
        ),
    )(x2, g2)

    return out.reshape(orig_shape)


def _reference(x, g, eps=1e-05):
    # Faithful transcription of the PyTorch forward (two-pass variance).
    x = x / jnp.max(x, axis=-1, keepdims=True)
    mean = jnp.mean(x, axis=-1, keepdims=True)
    var = jnp.mean((x - mean) ** 2, axis=-1, keepdims=True)
    return (x - mean) * jax.lax.rsqrt(var + eps) * g


if __name__ == "__main__":
    key = jax.random.PRNGKey(0)
    k1, k2, k3, k4, k5 = jax.random.split(key, 5)

    # Test 1: typical small shape (batch of sequences of hidden vectors), f32.
    batch, seq, hidden = 2, 8, 32
    x1 = jax.random.normal(k1, (batch, seq, hidden), dtype=jnp.float32)
    g1 = jnp.ones((hidden,), dtype=jnp.float32)        # nn.Parameter(torch.ones(dim))
    out1 = jax.block_until_ready(layer_norm(x1, g1))
    ref1 = _reference(x1, g1)
    assert out1.shape == x1.shape and out1.dtype == x1.dtype
    assert jnp.allclose(out1, ref1, atol=1e-5, rtol=1e-5), "mismatch vs reference (test 1)"

    # Test 2: ragged row count (not a multiple of the tile) + non-trivial g.
    x2 = jax.random.normal(k2, (3, 7, 256), dtype=jnp.float32)
    g2 = 1.0 + 0.1 * jax.random.normal(k3, (256,), dtype=jnp.float32)
    out2 = jax.block_until_ready(layer_norm(x2, g2))
    ref2 = _reference(x2, g2)
    assert out2.shape == x2.shape and out2.dtype == x2.dtype
    assert jnp.allclose(out2, ref2, atol=1e-5, rtol=1e-5), "mismatch vs reference (test 2)"

    # Test 3: bf16 input (exercises f32-upcast path + 16-lane sublane packing),
    # ragged rows.  Reference is computed in f32 on the same bf16-quantized
    # inputs so only the kernel's internal rounding is being measured.
    x3f = jax.random.normal(k4, (3, 5, 128), dtype=jnp.float32)
    g3f = 1.0 + 0.1 * jax.random.normal(k5, (128,), dtype=jnp.float32)
    x3 = x3f.astype(jnp.bfloat16)
    g3 = g3f.astype(jnp.bfloat16)
    out3 = jax.block_until_ready(layer_norm(x3, g3))
    ref3 = _reference(x3.astype(jnp.float32), g3.astype(jnp.float32))
    assert out3.shape == x3.shape and out3.dtype == jnp.bfloat16
    assert jnp.allclose(out3.astype(jnp.float32), ref3, atol=2e-2, rtol=2e-2), \
        "mismatch vs reference (test 3, bf16)"

    print("KERNEL_OK")
</pallas_src>

<mosaic_0001>
module attributes {stable_mosaic.version = 11 : i64} {
  func.func @_layernorm_kernel(%arg0: i32, %arg1: memref<8x32xf32, #tpu.memory_space<vmem>>, %arg2: memref<1x32xf32, #tpu.memory_space<vmem>>, %arg3: memref<8x32xf32, #tpu.memory_space<vmem>>) attributes {dimension_semantics = [#tpu.dimension_semantics<parallel>], iteration_bounds = array<i64: 2>, scalar_prefetch = 0 : i64, scratch_operands = 0 : i64, tpu.core_type = #tpu.core_type<tc>, window_params = [{transform_indices = @transform_0, window_bounds = array<i64: 8, 32>}, {pipeline_mode = #tpu.pipeline_mode<synchronous>, transform_indices = @transform_1, window_bounds = array<i64: 1, 32>}, {transform_indices = @transform_2, window_bounds = array<i64: 8, 32>}]} {
    %c0 = arith.constant 0 : index
    %c0_0 = arith.constant 0 : index
    %0 = vector.load %arg1[%c0, %c0_0] : memref<8x32xf32, #tpu.memory_space<vmem>>, vector<8x32xf32>
    %c0_1 = arith.constant 0 : index
    %c0_2 = arith.constant 0 : index
    %1 = vector.load %arg2[%c0_1, %c0_2] : memref<1x32xf32, #tpu.memory_space<vmem>>, vector<1x32xf32>
    %cst = arith.constant dense<0xFF800000> : vector<8xf32>
    %2 = vector.multi_reduction <maximumf>, %0, %cst [1] : vector<8x32xf32> to vector<8xf32>
    %3 = vector.shape_cast %2 : vector<8xf32> to vector<8x1xf32>
    %cst_3 = arith.constant 1.000000e+00 : f32
    %4 = vector.broadcast %cst_3 : f32 to vector<8x1xf32>
    %5 = arith.divf %4, %3 : vector<8x1xf32>
    %6 = vector.broadcast %5 : vector<8x1xf32> to vector<8x32xf32>
    %7 = arith.mulf %0, %6 : vector<8x32xf32>
    %cst_4 = arith.constant dense<0.000000e+00> : vector<8xf32>
    %8 = vector.multi_reduction <add>, %7, %cst_4 [1] : vector<8x32xf32> to vector<8xf32>
    %9 = vector.shape_cast %8 : vector<8xf32> to vector<8x1xf32>
    %cst_5 = arith.constant 3.200000e+01 : f32
    %10 = vector.broadcast %cst_5 : f32 to vector<8x1xf32>
    %11 = arith.divf %9, %10 : vector<8x1xf32>
    %12 = arith.mulf %7, %7 : vector<8x32xf32>
    %cst_6 = arith.constant dense<0.000000e+00> : vector<8xf32>
    %13 = vector.multi_reduction <add>, %12, %cst_6 [1] : vector<8x32xf32> to vector<8xf32>
    %14 = vector.shape_cast %13 : vector<8xf32> to vector<8x1xf32>
    %cst_7 = arith.constant 3.200000e+01 : f32
    %15 = vector.broadcast %cst_7 : f32 to vector<8x1xf32>
    %16 = arith.divf %14, %15 : vector<8x1xf32>
    %17 = arith.mulf %11, %11 : vector<8x1xf32>
    %18 = arith.subf %16, %17 : vector<8x1xf32>
    %cst_8 = arith.constant 0.000000e+00 : f32
    %19 = vector.broadcast %cst_8 : f32 to vector<8x1xf32>
    %20 = arith.maximumf %18, %19 : vector<8x1xf32>
    %21 = vector.broadcast %11 : vector<8x1xf32> to vector<8x32xf32>
    %22 = arith.subf %7, %21 : vector<8x32xf32>
    %cst_9 = arith.constant 9.99999974E-6 : f32
    %23 = vector.broadcast %cst_9 : f32 to vector<8x1xf32>
    %24 = arith.addf %20, %23 : vector<8x1xf32>
    %25 = math.rsqrt %24 : vector<8x1xf32>
    %26 = vector.broadcast %25 : vector<8x1xf32> to vector<8x32xf32>
    %27 = arith.mulf %22, %26 : vector<8x32xf32>
    %28 = vector.broadcast %1 : vector<1x32xf32> to vector<8x32xf32>
    %29 = arith.mulf %27, %28 : vector<8x32xf32>
    %c0_10 = arith.constant 0 : index
    %c0_11 = arith.constant 0 : index
    %30 = vector.load %arg3[%c0_10, %c0_11] : memref<8x32xf32, #tpu.memory_space<vmem>>, vector<8x32xf32>
    tpu.vector_store %arg3[%c0_10, %c0_11], %29 {strides = array<i32>} : memref<8x32xf32, #tpu.memory_space<vmem>>, vector<8x32xf32>,
    return
  }
  func.func @transform_0(%arg0: i32) -> (i32, i32) {
    %c0_i32 = arith.constant 0 : i32
    %c0_i32_0 = arith.constant 0 : i32
    return %arg0, %c0_i32 : i32, i32
  }
  func.func @transform_1(%arg0: i32) -> (i32, i32) {
    %c0_i32 = arith.constant 0 : i32
    %c0_i32_0 = arith.constant 0 : i32
    %c0_i32_1 = arith.constant 0 : i32
    return %c0_i32, %c0_i32_0 : i32, i32
  }
  func.func @transform_2(%arg0: i32) -> (i32, i32) {
    %c0_i32 = arith.constant 0 : i32
    %c0_i32_0 = arith.constant 0 : i32
    return %arg0, %c0_i32 : i32, i32
  }
}

</mosaic_0001>

<llo_original>
// kernel: tpu_custom_call.1
$region0: #{tpu_custom_call.1}
  #allocation0 [shape = 'u32[]', space=smem, size = 0x4, offset = 0x4, fixed_abs, tag = 'smem constant byte address 0x4 - core index']
  #allocation1 [shape = 'u32[144,128]{1,0:T(1,128)}', space=vmem, size = 0x12000, scoped, tag = 'internal scratch']
  %s0 = inlined_call_operand.hbm [shape: f32[16,32], index: 0, kind: input, shape index: {}]
  %s1 = inlined_call_operand.vmem [shape: f32[1,32], index: 1, kind: input, shape index: {}]
  %s2 = inlined_call_operand.hbm [shape: f32[16,32], index: 2, kind: output, shape index: {}]
  %s3 = sld [smem:[#allocation0]]
  $region45: #{tpu_custom_call.1} parent=0
    _
  %s5 = ssub.s32 1, %s3
  %s6 = scalar_select 0, %s5, %s3
  $region1: #{tpu_custom_call.1} parent=0
    #allocation2 [shape = 'u8[8192]{0}', space=vmem, size = 0x2000, scoped, tag = 'input window, operand 0']
    #allocation3 [shape = 's32[2]{0}', space=sflag, size = 0x8, scoped, tag = 'scoped memory for tpu_custom_call.1']
    #allocation4 [shape = 's32[2]{0}', space=sflag, size = 0x8, scoped, tag = 'scoped memory for tpu_custom_call.1']
    #allocation5 [shape = 'u8[8192]{0}', space=vmem, size = 0x2000, scoped, tag = 'output window, operand 0']
    %7 = vsyncpa [#allocation3], 0
    %s8 = scalar_lea.sflag [#allocation3], 1
    %9 = vsyncpa %s8, 0
    %10 = vsyncpa [#allocation4], 0
    %s11 = scalar_lea.sflag [#allocation4], 1
    %12 = vsyncpa %s11, 0
    loop: start=0, step=1, limit=4
    $region2: #{tpu_custom_call.1} parent=1 // loop_pre_header
      _
    $region3: #{tpu_custom_call.1} parent=1 // loop_header
      %s14 = sphi 0, %s18
      %p15 = scmp.ge.s32.totalorder %s14, 4
      %s24 = sphi 0, %s26
      %s27 = sphi 0, %s24
      %s28 = sphi 0, %s27
      %s44 = sphi 0, %s28
      %s48 = sphi 0, %s48
      %s50 = sphi 0, %s48
      %s51 = sphi 0, %s50
      %s65 = sphi 0, %s51
      %s71 = sphi 0, %s73
      %s74 = sphi 0, %s71
      %s75 = sphi 0, %s74
      %s91 = sphi 0, %s75
    $region4: #{tpu_custom_call.1} parent=1 // loop_header_branch
      %17 = sbr.rel (%p15) target = $region8
    $region5: #{tpu_custom_call.1} parent=1 // loop_body
      %s19 = ssub.s32 %s14, 1
      %s20 = ssub.s32 %s14, 2
      %s21 = sadd.s32 %s14, 1
      %s22 = ssub.s32 %s14, %s21
      %p23 = scmp.eq.s32.totalorder %s22, 0
      %s25 = sadd.s32 %s24, 1
      %s26 = scalar_select %p23, %s24, %s25
      %p29 = pneg %p23
      %p30 = scmp.eq.s32.totalorder %s14, 1
      %p31 = por %p29, %p30
      %p32 = scmp.ne.s32.totalorder %s24, %s27
      %p33 = scmp.eq.s32.totalorder %s14, 0
      %p34 = por %p32, %p33
      %p35 = scmp.ne.s32.totalorder %s24, %s27
      %p36 = scmp.eq.s32.totalorder %s19, 1
      %p37 = por %p35, %p36
      %p38 = scmp.ne.s32.totalorder %s27, %s28
      %p39 = scmp.eq.s32.totalorder %s19, 0
      %p40 = por %p38, %p39
      %p41 = scmp.ne.s32.totalorder %s27, %s28
      %p42 = scmp.eq.s32.totalorder %s20, 1
      %p43 = por %p41, %p42
      %p45 = scmp.ne.s32.totalorder %s28, %s44
      %p46 = scmp.eq.s32.totalorder %s20, 0
      %p47 = por %p45, %p46
      %s49 = sadd.s32 %s48, 1
      %p52 = scmp.eq.s32.totalorder %s14, 1
      %p53 = scmp.ne.s32.totalorder %s48, %s50
      %p54 = scmp.eq.s32.totalorder %s14, 0
      %p55 = por %p53, %p54
      %p56 = scmp.ne.s32.totalorder %s48, %s50
      %p57 = scmp.eq.s32.totalorder %s19, 1
      %p58 = por %p56, %p57
      %p59 = scmp.ne.s32.totalorder %s50, %s51
      %p60 = scmp.eq.s32.totalorder %s19, 0
      %p61 = por %p59, %p60
      %p62 = scmp.ne.s32.totalorder %s50, %s51
      %p63 = scmp.eq.s32.totalorder %s20, 1
      %p64 = por %p62, %p63
      %p66 = scmp.ne.s32.totalorder %s51, %s65
      %p67 = scmp.eq.s32.totalorder %s20, 0
      %p68 = por %p66, %p67
      %s69 = ssub.s32 %s14, %s21
      %p70 = scmp.eq.s32.totalorder %s69, 0
      %s72 = sadd.s32 %s71, 1
      %s73 = scalar_select %p70, %s71, %s72
      %p76 = pneg %p70
      %p77 = scmp.eq.s32.totalorder %s14, 1
      %p78 = por %p76, %p77
      %p79 = scmp.ne.s32.totalorder %s71, %s74
      %p80 = scmp.eq.s32.totalorder %s14, 0
      %p81 = por %p79, %p80
      %p82 = scmp.ne.s32.totalorder %s71, %s74
      %p83 = scmp.eq.s32.totalorder %s19, 1
      %p84 = por %p82, %p83
      %p85 = scmp.ne.s32.totalorder %s74, %s75
      %p86 = scmp.eq.s32.totalorder %s19, 0
      %p87 = por %p85, %p86
      %p88 = scmp.ne.s32.totalorder %s74, %s75
      %p89 = scmp.eq.s32.totalorder %s20, 1
      %p90 = por %p88, %p89
      %p92 = scmp.ne.s32.totalorder %s75, %s91
      %p93 = scmp.eq.s32.totalorder %s20, 0
      %p94 = por %p92, %p93
      %p95 = scmp.le.s32.totalorder 1, %s14
      %p96 = scmp.lt.s32.totalorder %s14, 3
      %p97 = pnand %p95, %p96
      %p98 = pneg %p97
      // Predicated region
      $region9: #{tpu_custom_call.1} parent=5 // pred_check
        _
      $region10: #{tpu_custom_call.1} parent=5 // pred_check_branch
        %100 = sbr.rel (%p97) target = $region12
      $region11: #{tpu_custom_call.1} parent=5 // pred_region
        %s101 = ssub.s32 %s14, 1
        // Predicated region
        $region13: #{tpu_custom_call.1} parent=11 // pred_check
          %p102 = pneg %p61
        $region14: #{tpu_custom_call.1} parent=11 // pred_check_branch
          %104 = sbr.rel (%p102) target = $region16
        $region15: #{tpu_custom_call.1} parent=11 // pred_region
          _
        $region16: #{tpu_custom_call.1} parent=11 // pred_fallthru
          _
      $region12: #{tpu_custom_call.1} parent=5 // pred_fallthru
        _
      %p105 = scmp.lt.s32.totalorder %s14, 2
      // Predicated region
      $region17: #{tpu_custom_call.1} parent=5 // pred_check
        %p106 = pneg %p105
      $region18: #{tpu_custom_call.1} parent=5 // pred_check_branch
        %108 = sbr.rel (%p106) target = $region20
      $region19: #{tpu_custom_call.1} parent=5 // pred_region
        // Predicated region
        $region21: #{tpu_custom_call.1} parent=19 // pred_check
          %p109 = pneg %p34
        $region22: #{tpu_custom_call.1} parent=19 // pred_check_branch
          %111 = sbr.rel (%p109) target = $region24
        $region23: #{tpu_custom_call.1} parent=19 // pred_region
          %s112 = sand.u32 %s24, 1
          %s113 = scalar_lea.sflag [#allocation3], %s112
          %s114 = sand.u32 %s24, 1
          %s115 = smul.addr %s114, 8
          %s116 = scalar_lea.vmem [#allocation2], %s115
          %s118 = ssub.s32 128, 128
          %119 = vsyncadd %s113, %s118
          %s120 = smul.addr %s14, 128
          %s121 = scalar_lea.hbm %s0, %s120
          %s123 = sshll.u32 %s116, 4
          %s124 = int_to_ptr.vmem [resolvable:$true] %s123
          %126 = dma.hbm_to_vmem [thread:$0]  %s121, 128, %s124, %s113
        $region24: #{tpu_custom_call.1} parent=19 // pred_fallthru
          _
      $region20: #{tpu_custom_call.1} parent=5 // pred_fallthru
        _
      %p127 = scmp.le.s32.totalorder 1, %s14
      %p128 = scmp.lt.s32.totalorder %s14, 3
      %p129 = pnand %p127, %p128
      %p130 = pneg %p129
      // Predicated region
      $region25: #{tpu_custom_call.1} parent=5 // pred_check
        _
      $region26: #{tpu_custom_call.1} parent=5 // pred_check_branch
        %132 = sbr.rel (%p129) target = $region28
      $region27: #{tpu_custom_call.1} parent=5 // pred_region
        %s133 = ssub.s32 %s14, 1
        %s134 = sand.u32 %s27, 1
        %s135 = scalar_lea.sflag [#allocation3], %s134
        %s136 = sand.u32 %s27, 1
        %s137 = smul.addr %s136, 8
        %s138 = scalar_lea.vmem [#allocation2], %s137
        // Predicated region
        $region29: #{tpu_custom_call.1} parent=27 // pred_check
          %p139 = pneg %p40
        $region30: #{tpu_custom_call.1} parent=27 // pred_check_branch
          %141 = sbr.rel (%p139) target = $region32
        $region31: #{tpu_custom_call.1} parent=27 // pred_region
          %142 = dma.done %s135, 128
        $region32: #{tpu_custom_call.1} parent=27 // pred_fallthru
          _
        %s143 = sand.u32 %s27, 1
        %s144 = scalar_lea.sflag [#allocation3], %s143
        %s145 = sand.u32 %s27, 1
        %s146 = smul.addr %s145, 8
        %s147 = scalar_lea.vmem [#allocation2], %s146
        %p148 = pneg %p40
        %p149 = pneg %p37
        %p150 = pneg %p61
        %p151 = pneg %p58
        %p152 = pneg %p87
        %p153 = pneg %p84
        %s154 = sand.u32 %s74, 1
        %s155 = scalar_lea.sflag [#allocation4], %s154
        %s156 = sand.u32 %s74, 1
        %s157 = smul.addr %s156, 8
        %s158 = scalar_lea.vmem [#allocation5], %s157
        %v159 = vld [vmem:[%s138] sm:$0xff]
        %v160 = vld [vmem:[%s1] sm:$0x1]
        %vm161 = vcmask 261120
        %v162 = vsel %vm161, %v159, -inf
        %163 = vmax.xlane.f32.xlu0 %v162
        %v164 = vpop.xlane.xlu0 %163
        %v165 = vrcp.pop %v164
        %v166 = vmul.f32 1.0, %v165
        %v167 = vmul.f32 %v159, %v166
        %v168 = vsel %vm161, %v167, 0.0
        %169 = vadd.xlane.f32.xlu0 %v168
        %v170 = vpop.xlane.xlu0 %169
        %v171 = vrcp.pop 32.0
        %v172 = vmul.f32 %v170, %v171
        %v173 = vmul.f32 %v167, %v167
        %v174 = vsel %vm161, %v173, 0.0
        %175 = vadd.xlane.f32.xlu0 %v174
        %v176 = vpop.xlane.xlu0 %175
        %v177 = vmul.f32 %v176, %v171
        %v178 = vmul.f32 %v172, %v172
        %v179 = vsub.f32 %v177, %v178
        %v180 = vmax.f32 %v179, 0.0
        %v181 = vsub.f32 %v167, %v172
        %v182 = vadd.f32 %v180, 1e-05
        %v183 = vrsqrt.pop %v182
        %v184 = vmul.f32 %v181, %v183
        %v186 = vlaneseq
        %v187 = vshrl.u32 %v186, 7
        %v188 = vsub.s32 0, %v187
        %v189 = vrot.slane %v160, %v188
        %v191 = vmul.f32 %v184, %v189
        %192 = vst.msk [vmem:[%s158] sm:$0xff] %vm161, %v191
        %s193 = sand.u32 %s74, 1
        %s194 = scalar_lea.sflag [#allocation4], %s193
        %s195 = sand.u32 %s74, 1
        %s196 = smul.addr %s195, 8
        %s197 = scalar_lea.vmem [#allocation5], %s196
        // Predicated region
        $region33: #{tpu_custom_call.1} parent=27 // pred_check
          %p198 = pneg %p84
        $region34: #{tpu_custom_call.1} parent=27 // pred_check_branch
          %200 = sbr.rel (%p198) target = $region36
        $region35: #{tpu_custom_call.1} parent=27 // pred_region
          %s202 = ssub.s32 128, 128
          %203 = vsyncadd %s194, %s202
          %s204 = smul.addr %s19, 128
          %s205 = scalar_lea.hbm %s2, %s204
          %s207 = sshll.u32 %s197, 4
          %s208 = int_to_ptr.vmem [resolvable:$true] %s207
          %210 = dma.vmem_to_hbm [thread:$0]  %s208, 128, %s205, %s194
        $region36: #{tpu_custom_call.1} parent=27 // pred_fallthru
          _
      $region28: #{tpu_custom_call.1} parent=5 // pred_fallthru
        _
      %p211 = scmp.le.s32.totalorder 2, %s14
      // Predicated region
      $region37: #{tpu_custom_call.1} parent=5 // pred_check
        %p212 = pneg %p211
      $region38: #{tpu_custom_call.1} parent=5 // pred_check_branch
        %214 = sbr.rel (%p212) target = $region40
      $region39: #{tpu_custom_call.1} parent=5 // pred_region
        %s215 = ssub.s32 %s14, 2
        // Predicated region
        $region41: #{tpu_custom_call.1} parent=39 // pred_check
          %p216 = pneg %p90
        $region42: #{tpu_custom_call.1} parent=39 // pred_check_branch
          %218 = sbr.rel (%p216) target = $region44
        $region43: #{tpu_custom_call.1} parent=39 // pred_region
          %s219 = sand.u32 %s75, 1
          %s220 = scalar_lea.sflag [#allocation4], %s219
          %s221 = sand.u32 %s75, 1
          %s222 = smul.addr %s221, 8
          %s223 = scalar_lea.vmem [#allocation5], %s222
          %224 = dma.done %s220, 128
        $region44: #{tpu_custom_call.1} parent=39 // pred_fallthru
          _
      $region40: #{tpu_custom_call.1} parent=5 // pred_fallthru
        _
    $region6: #{tpu_custom_call.1} parent=1 // loop_footer
      %s18 = sadd.s32 1, %s14
    $region7: #{tpu_custom_call.1} parent=1 // loop_footer_branch
      %13 = sbr.rel target = $region3
    $region8: #{tpu_custom_call.1} parent=1 // loop_exit
      _
    %225 = vsyncpa [#allocation3], 1
    %s226 = scalar_lea.sflag [#allocation3], 1
    %227 = vsyncpa %s226, 1
    %228 = vsyncpa [#allocation4], 1
    %s229 = scalar_lea.sflag [#allocation4], 1
    %230 = vsyncpa %s229, 1

</llo_original>
